<compile_context>
chip_gen: v7x
topology: tpu7x:2x2x1
jax: 0.10.0
libtpu: 0.0.40
codegen_flags: <defaults>
</compile_context>

<pallas_src>
import jax
import jax.numpy as jnp
from jax.experimental import pallas as pl
from jax.experimental.pallas import tpu as pltpu


def _add_kernel(a_ref, b_ref, o_ref):
    # Hot path: pure VPU elementwise add on the current VMEM tile.
    o_ref[...] = a_ref[...] + b_ref[...]


_LANE = 1024               # lanes per flattened row (multiple of 128)
_TARGET_BLOCK_ROWS = 256   # 256 x 1024 x 4B = 1 MiB per f32 array per grid step


def _round_up(x: int, m: int) -> int:
    return ((x + m - 1) // m) * m


def pallas_add(signal_a: jax.Array, signal_b: jax.Array) -> jax.Array:
    """Elementwise add of two equally-shaped signals via a tiled Pallas kernel."""
    assert signal_a.shape == signal_b.shape
    assert signal_a.dtype == signal_b.dtype
    orig_shape = signal_a.shape
    dtype = signal_a.dtype

    n = signal_a.size
    # Flatten to a lane-dense 2D slab: (rows, _LANE). Block rows are a multiple
    # of 8 (full sublanes); rows are padded up to a multiple of the block so the
    # grid divides exactly (never a single whole-array block for big inputs).
    rows = pl.cdiv(n, _LANE)
    block_rows = min(_TARGET_BLOCK_ROWS, _round_up(rows, 8))
    padded_rows = _round_up(rows, block_rows)
    padded_n = padded_rows * _LANE

    a_flat = signal_a.reshape(-1)
    b_flat = signal_b.reshape(-1)
    if padded_n != n:
        pad = padded_n - n
        a_flat = jnp.pad(a_flat, (0, pad))
        b_flat = jnp.pad(b_flat, (0, pad))
    a2 = a_flat.reshape(padded_rows, _LANE)
    b2 = b_flat.reshape(padded_rows, _LANE)

    grid = (padded_rows // block_rows,)

    out2 = pl.pallas_call(
        _add_kernel,
        out_shape=jax.ShapeDtypeStruct((padded_rows, _LANE), dtype),
        grid=grid,
        in_specs=[
            pl.BlockSpec((block_rows, _LANE), lambda i: (i, 0)),
            pl.BlockSpec((block_rows, _LANE), lambda i: (i, 0)),
        ],
        out_specs=pl.BlockSpec((block_rows, _LANE), lambda i: (i, 0)),
        compiler_params=pltpu.CompilerParams(
            dimension_semantics=("parallel",)),
    )(a2, b2)

    out_flat = out2.reshape(-1)
    if padded_n != n:
        out_flat = out_flat[:n]
    return out_flat.reshape(orig_shape)


class ProcessorPallas:
    """JAX/Pallas mirror of the abstract PyTorch Processor base class."""

    def __init__(self, name: str):
        self.name = name

    def get_param_sizes(self):
        raise NotImplementedError

    def __call__(self, *args, **kwargs):
        raise NotImplementedError


class AddPallas(ProcessorPallas):
    """Concrete Processor: add two audio signals (no parameters)."""

    def __init__(self, name: str = "add", n_samples: int = 64000):
        super().__init__(name)
        self.n_samples = n_samples

    def get_param_sizes(self):
        return {}

    def __call__(self, signal_a, signal_b):
        # TODO(synk): for production (B=2, T=64000, ~512 KiB/signal) the real
        # win is fusing this add into the producing synth kernel instead of a
        # standalone HBM round-trip.
        return pallas_add(signal_a, signal_b)


if __name__ == "__main__":
    key = jax.random.PRNGKey(0)
    ka, kb, kc, kd = jax.random.split(key, 4)

    add = AddPallas(n_samples=2048)

    # Case 1: small, DDSP-style shape (exercises the padded, single-block path).
    batch, n_samples = 2, 2048
    signal_a = jax.random.normal(ka, (batch, n_samples), dtype=jnp.float32)
    signal_b = jax.random.normal(kb, (batch, n_samples), dtype=jnp.float32)
    out = jax.block_until_ready(add(signal_a, signal_b))
    ref = signal_a + signal_b
    assert out.shape == ref.shape and out.dtype == ref.dtype
    assert jnp.allclose(out, ref, atol=1e-6, rtol=1e-6)

    # Case 2: larger signal (exercises the multi-block, pipelined grid path).
    batch2, n_samples2 = 8, 131072   # -> 1024 rows of 1024 lanes, grid = (4,)
    big_a = jax.random.normal(kc, (batch2, n_samples2), dtype=jnp.float32)
    big_b = jax.random.normal(kd, (batch2, n_samples2), dtype=jnp.float32)
    out2 = jax.block_until_ready(add(big_a, big_b))
    ref2 = big_a + big_b
    assert out2.shape == ref2.shape and out2.dtype == ref2.dtype
    assert jnp.allclose(out2, ref2, atol=1e-6, rtol=1e-6)

    print("KERNEL_OK")
</pallas_src>

<mosaic_0001>
module attributes {stable_mosaic.version = 11 : i64} {
  func.func @_add_kernel(%arg0: i32, %arg1: memref<8x1024xf32, #tpu.memory_space<vmem>>, %arg2: memref<8x1024xf32, #tpu.memory_space<vmem>>, %arg3: memref<8x1024xf32, #tpu.memory_space<vmem>>) attributes {dimension_semantics = [#tpu.dimension_semantics<parallel>], iteration_bounds = array<i64: 1>, scalar_prefetch = 0 : i64, scratch_operands = 0 : i64, tpu.core_type = #tpu.core_type<tc>, window_params = [{transform_indices = @transform_0, window_bounds = array<i64: 8, 1024>}, {transform_indices = @transform_1, window_bounds = array<i64: 8, 1024>}, {transform_indices = @transform_2, window_bounds = array<i64: 8, 1024>}]} {
    %c0 = arith.constant 0 : index
    %c0_0 = arith.constant 0 : index
    %0 = vector.load %arg1[%c0, %c0_0] : memref<8x1024xf32, #tpu.memory_space<vmem>>, vector<8x1024xf32>
    %c0_1 = arith.constant 0 : index
    %c0_2 = arith.constant 0 : index
    %1 = vector.load %arg2[%c0_1, %c0_2] : memref<8x1024xf32, #tpu.memory_space<vmem>>, vector<8x1024xf32>
    %2 = arith.addf %0, %1 : vector<8x1024xf32>
    %c0_3 = arith.constant 0 : index
    %c0_4 = arith.constant 0 : index
    %3 = vector.load %arg3[%c0_3, %c0_4] : memref<8x1024xf32, #tpu.memory_space<vmem>>, vector<8x1024xf32>
    tpu.vector_store %arg3[%c0_3, %c0_4], %2 {strides = array<i32>} : memref<8x1024xf32, #tpu.memory_space<vmem>>, vector<8x1024xf32>,
    return
  }
  func.func @transform_0(%arg0: i32) -> (i32, i32) {
    %c0_i32 = arith.constant 0 : i32
    %c0_i32_0 = arith.constant 0 : i32
    return %arg0, %c0_i32 : i32, i32
  }
  func.func @transform_1(%arg0: i32) -> (i32, i32) {
    %c0_i32 = arith.constant 0 : i32
    %c0_i32_0 = arith.constant 0 : i32
    return %arg0, %c0_i32 : i32, i32
  }
  func.func @transform_2(%arg0: i32) -> (i32, i32) {
    %c0_i32 = arith.constant 0 : i32
    %c0_i32_0 = arith.constant 0 : i32
    return %arg0, %c0_i32 : i32, i32
  }
}

</mosaic_0001>

<llo_original>
// kernel: tpu_custom_call.1
$region0: #{tpu_custom_call.1}
  #allocation0 [shape = 'u32[]', space=smem, size = 0x4, offset = 0x4, fixed_abs, tag = 'smem constant byte address 0x4 - core index']
  #allocation1 [shape = 'u32[144,128]{1,0:T(1,128)}', space=vmem, size = 0x12000, scoped, tag = 'internal scratch']
  %s0 = inlined_call_operand.hbm [shape: f32[8,1024], index: 0, kind: input, shape index: {}]
  %s1 = inlined_call_operand.hbm [shape: f32[8,1024], index: 1, kind: input, shape index: {}]
  %s2 = inlined_call_operand.hbm [shape: f32[8,1024], index: 2, kind: output, shape index: {}]
  %s3 = sld [smem:[#allocation0]]
  $region26: #{tpu_custom_call.1} parent=0
    _
  %s5 = ssub.s32 1, %s3
  %s6 = scalar_select 0, %s5, %s3
  $region1: #{tpu_custom_call.1} parent=0
    #allocation2 [shape = 'u8[32768]{0}', space=vmem, size = 0x8000, scoped, tag = 'input window, operand 0, single buffered']
    #allocation3 [shape = 's32[1]{0}', space=sflag, size = 0x4, scoped, tag = 'scoped memory for tpu_custom_call.1']
    #allocation4 [shape = 's32[1]{0}', space=sflag, size = 0x4, scoped, tag = 'scoped memory for tpu_custom_call.1']
    #allocation5 [shape = 'u8[32768]{0}', space=vmem, size = 0x8000, scoped, tag = 'input window, operand 1, single buffered']
    #allocation6 [shape = 's32[1]{0}', space=sflag, size = 0x4, scoped, tag = 'scoped memory for tpu_custom_call.1']
    #allocation7 [shape = 'u8[32768]{0}', space=vmem, size = 0x8000, scoped, tag = 'output window, operand 0, single buffered']
    %7 = vsyncpa [#allocation3], 0
    %8 = vsyncpa [#allocation6], 0
    %9 = vsyncpa [#allocation4], 0
    // Predicated region
    $region2: #{tpu_custom_call.1} parent=1 // pred_check
      _
    $region3: #{tpu_custom_call.1} parent=1 // pred_check_branch
      %11 = sbr.rel (0) target = $region5
    $region4: #{tpu_custom_call.1} parent=1 // pred_region
      %s13 = ssub.s32 1024, 1024
      %14 = vsyncadd [#allocation3], %s13
      %s16 = sshll.u32 [#allocation2], 4
      %s17 = int_to_ptr.vmem [resolvable:$true] %s16
      %19 = dma.hbm_to_vmem [thread:$0]  %s0, 1024, %s17, [#allocation3]
    $region5: #{tpu_custom_call.1} parent=1 // pred_fallthru
      _
    // Predicated region
    $region6: #{tpu_custom_call.1} parent=1 // pred_check
      _
    $region7: #{tpu_custom_call.1} parent=1 // pred_check_branch
      %21 = sbr.rel (0) target = $region9
    $region8: #{tpu_custom_call.1} parent=1 // pred_region
      %s23 = ssub.s32 1024, 1024
      %24 = vsyncadd [#allocation6], %s23
      %s26 = sshll.u32 [#allocation5], 4
      %s27 = int_to_ptr.vmem [resolvable:$true] %s26
      %29 = dma.hbm_to_vmem [thread:$0]  %s1, 1024, %s27, [#allocation6]
    $region9: #{tpu_custom_call.1} parent=1 // pred_fallthru
      _
    // Predicated region
    $region10: #{tpu_custom_call.1} parent=1 // pred_check
      _
    $region11: #{tpu_custom_call.1} parent=1 // pred_check_branch
      %31 = sbr.rel (0) target = $region13
    $region12: #{tpu_custom_call.1} parent=1 // pred_region
      %32 = dma.done [#allocation3], 1024
    $region13: #{tpu_custom_call.1} parent=1 // pred_fallthru
      _
    // Predicated region
    $region14: #{tpu_custom_call.1} parent=1 // pred_check
      _
    $region15: #{tpu_custom_call.1} parent=1 // pred_check_branch
      %34 = sbr.rel (0) target = $region17
    $region16: #{tpu_custom_call.1} parent=1 // pred_region
      %35 = dma.done [#allocation6], 1024
    $region17: #{tpu_custom_call.1} parent=1 // pred_fallthru
      _
    %v36 = vld [vmem:[#allocation2] sm:$0xff]
    %v37 = vld [vmem:[#allocation2 + $0x8] sm:$0xff]
    %v38 = vld [vmem:[#allocation2 + $0x10] sm:$0xff]
    %v39 = vld [vmem:[#allocation2 + $0x18] sm:$0xff]
    %v40 = vld [vmem:[#allocation2 + $0x20] sm:$0xff]
    %v41 = vld [vmem:[#allocation2 + $0x28] sm:$0xff]
    %v42 = vld [vmem:[#allocation2 + $0x30] sm:$0xff]
    %v43 = vld [vmem:[#allocation2 + $0x38] sm:$0xff]
    %v44 = vld [vmem:[#allocation5] sm:$0xff]
    %v45 = vld [vmem:[#allocation5 + $0x8] sm:$0xff]
    %v46 = vld [vmem:[#allocation5 + $0x10] sm:$0xff]
    %v47 = vld [vmem:[#allocation5 + $0x18] sm:$0xff]
    %v48 = vld [vmem:[#allocation5 + $0x20] sm:$0xff]
    %v49 = vld [vmem:[#allocation5 + $0x28] sm:$0xff]
    %v50 = vld [vmem:[#allocation5 + $0x30] sm:$0xff]
    %v51 = vld [vmem:[#allocation5 + $0x38] sm:$0xff]
    %v52 = vadd.f32 %v36, %v44
    %v53 = vadd.f32 %v37, %v45
    %v54 = vadd.f32 %v38, %v46
    %v55 = vadd.f32 %v39, %v47
    %v56 = vadd.f32 %v40, %v48
    %v57 = vadd.f32 %v41, %v49
    %v58 = vadd.f32 %v42, %v50
    %v59 = vadd.f32 %v43, %v51
    %60 = vst [vmem:[#allocation7] sm:$0xff] %v52
    %61 = vst [vmem:[#allocation7 + $0x8] sm:$0xff] %v53
    %62 = vst [vmem:[#allocation7 + $0x10] sm:$0xff] %v54
    %63 = vst [vmem:[#allocation7 + $0x18] sm:$0xff] %v55
    %64 = vst [vmem:[#allocation7 + $0x20] sm:$0xff] %v56
    %65 = vst [vmem:[#allocation7 + $0x28] sm:$0xff] %v57
    %66 = vst [vmem:[#allocation7 + $0x30] sm:$0xff] %v58
    %67 = vst [vmem:[#allocation7 + $0x38] sm:$0xff] %v59
    // Predicated region
    $region18: #{tpu_custom_call.1} parent=1 // pred_check
      _
    $region19: #{tpu_custom_call.1} parent=1 // pred_check_branch
      %69 = sbr.rel (0) target = $region21
    $region20: #{tpu_custom_call.1} parent=1 // pred_region
      %s71 = ssub.s32 1024, 1024
      %72 = vsyncadd [#allocation4], %s71
      %s74 = sshll.u32 [#allocation7], 4
      %s75 = int_to_ptr.vmem [resolvable:$true] %s74
      %77 = dma.vmem_to_hbm [thread:$0]  %s75, 1024, %s2, [#allocation4]
    $region21: #{tpu_custom_call.1} parent=1 // pred_fallthru
      _
    // Predicated region
    $region22: #{tpu_custom_call.1} parent=1 // pred_check
      _
    $region23: #{tpu_custom_call.1} parent=1 // pred_check_branch
      %79 = sbr.rel (0) target = $region25
    $region24: #{tpu_custom_call.1} parent=1 // pred_region
      %80 = dma.done [#allocation4], 1024
    $region25: #{tpu_custom_call.1} parent=1 // pred_fallthru
      _
    %81 = vsyncpa [#allocation3], 1
    %82 = vsyncpa [#allocation6], 1
    %83 = vsyncpa [#allocation4], 1

</llo_original>
